<compile_context>
chip_gen: v6e
topology: v6e:2x2x1
jax: 0.10.0
libtpu: 0.0.40
codegen_flags: <defaults>
</compile_context>

<pallas_src>
import jax
import jax.numpy as jnp
from jax.experimental import pallas as pl
from jax.experimental.pallas import tpu as pltpu

_SUBLANE = 8  # f32 sublane granularity (x stays f32 in HBM)


def _round_up(n, m):
    return ((n + m - 1) // m) * m


def _cdiv(a, b):
    return (a + b - 1) // b


def mlp_kernel(x_ref, w1_ref, b1_ref, w2_ref, b2_ref, w3_ref, b3_ref, out_ref):
    # In-kernel cast of x to the compute dtype (identity when f32); biases stay f32.
    x = x_ref[...].astype(w1_ref.dtype)
    # Layer 1 (MXU matmul, f32 accumulation; bias + ReLU on the VPU)
    h = jnp.dot(x, w1_ref[...], preferred_element_type=jnp.float32)
    h = jnp.maximum(h + b1_ref[...], 0.0)
    # Layer 2
    h = jnp.dot(h.astype(w2_ref.dtype), w2_ref[...], preferred_element_type=jnp.float32)
    h = jnp.maximum(h + b2_ref[...], 0.0)
    # Layer 3 (logits; output block is the full, unpadded class dim)
    o = jnp.dot(h.astype(w3_ref.dtype), w3_ref[...], preferred_element_type=jnp.float32)
    out_ref[...] = (o + b3_ref[...]).astype(out_ref.dtype)


def neural_model_forward(x, w1, b1, w2, b2, w3, b3, *,
                         block_batch=4096, compute_dtype=jnp.float32):
    """x: [B, input_size] f32; wN: [in, out]; bN: [1, out]. Returns f32 [B, num_classes]."""
    B, din = x.shape
    hidden = w1.shape[1]
    num_classes = w3.shape[1]

    # ---- batch tiling -------------------------------------------------------
    tb = min(_round_up(block_batch, _SUBLANE), _round_up(B, _SUBLANE))
    # Ensure >=2 grid steps when the batch is big enough, so the "parallel"
    # batch axis actually splits across v7x's 2 TensorCores (no-op on v5e/v6e).
    if B >= 2 * _SUBLANE:
        tb = min(tb, _round_up(_cdiv(B, 2), _SUBLANE))
    tb = max(tb, _SUBLANE)
    b_pad = _round_up(B, tb)
    grid = (b_pad // tb,)

    # Only the ragged tail (if any) is padded; no wrapper-side cast pass over x.
    xp = x if b_pad == B else jnp.pad(x, ((0, b_pad - B), (0, 0)))

    # Weights/biases are tiny & resident; cast once (identity for f32 default).
    w1c = w1.astype(compute_dtype)
    w2c = w2.astype(compute_dtype)
    w3c = w3.astype(compute_dtype)
    b1c = b1.astype(jnp.float32)
    b2c = b2.astype(jnp.float32)
    b3c = b3.astype(jnp.float32)

    def resident(shape):
        return pl.BlockSpec(shape, lambda i: (0, 0))

    bytes_per = lambda a: a.size * a.dtype.itemsize
    weight_bytes = sum(map(bytes_per, (w1c, b1c, w2c, b2c, w3c, b3c)))
    cost = pl.CostEstimate(
        flops=2 * b_pad * (din * hidden + hidden * hidden + hidden * num_classes),
        transcendentals=0,
        bytes_accessed=bytes_per(xp) + weight_bytes + b_pad * num_classes * 4,
    )

    # ---- VMEM budget: double-buffered x / out tiles + resident weights -------
    tile_bytes = (
        2 * tb * din * xp.dtype.itemsize        # x tile (double-buffered)
        + 2 * tb * num_classes * 4              # out tile (double-buffered)
        + 2 * weight_bytes                      # resident blocks (default buffering)
    )
    # Generation-aware cap: ~48 MiB on v7x (64 MiB/TC), ~96 MiB on v5e/v6e (128 MiB).
    try:
        vmem_cap = int(pltpu.get_tpu_info().vmem_capacity_bytes)
    except Exception:
        vmem_cap = 64 * 2**20  # conservative fallback (v7x-sized)
    vmem_ceiling = (3 * vmem_cap) // 4
    vmem_limit = int(min(max(2 * tile_bytes, 16 * 2**20), vmem_ceiling))

    out_padded = pl.pallas_call(
        mlp_kernel,
        out_shape=jax.ShapeDtypeStruct((b_pad, num_classes), jnp.float32),
        grid=grid,
        in_specs=[
            pl.BlockSpec((tb, din), lambda i: (i, 0)),   # x tile marches over batch
            resident((din, hidden)),                     # w1 (loaded once)
            resident((1, hidden)),                       # b1
            resident((hidden, hidden)),                  # w2
            resident((1, hidden)),                       # b2
            resident((hidden, num_classes)),             # w3
            resident((1, num_classes)),                  # b3
        ],
        out_specs=pl.BlockSpec((tb, num_classes), lambda i: (i, 0)),
        compiler_params=pltpu.CompilerParams(
            dimension_semantics=("parallel",),  # v7x: shard batch tiles across 2 TCs
            vmem_limit_bytes=vmem_limit,
        ),
        cost_estimate=cost,
    )(xp, w1c, b1c, w2c, b2c, w3c, b3c)

    return out_padded if b_pad == B else out_padded[:B]


def init_params(key, input_size, hidden_size, num_classes):
    """Deterministic init mimicking nn.Linear's uniform(-1/sqrt(fan_in), 1/sqrt(fan_in))."""
    ks = jax.random.split(key, 6)

    def linear(kw, kb, fan_in, fan_out):
        bound = 1.0 / jnp.sqrt(fan_in)
        # stored as [in, out] (transposed vs. PyTorch's [out, in])
        w = jax.random.uniform(kw, (fan_in, fan_out), jnp.float32, -bound, bound)
        b = jax.random.uniform(kb, (1, fan_out), jnp.float32, -bound, bound)
        return w, b

    w1, b1 = linear(ks[0], ks[1], input_size, hidden_size)
    w2, b2 = linear(ks[2], ks[3], hidden_size, hidden_size)
    w3, b3 = linear(ks[4], ks[5], hidden_size, num_classes)
    return w1, b1, w2, b2, w3, b3


def _reference(x, params):
    w1, b1, w2, b2, w3, b3 = params
    h = jnp.maximum(x @ w1 + b1, 0.0)
    h = jnp.maximum(h @ w2 + b2, 0.0)
    return h @ w3 + b3


if __name__ == "__main__":
    input_size, hidden_size, num_classes = 32, 32, 8

    key = jax.random.PRNGKey(0)
    k_x, k_x2, k_p = jax.random.split(key, 3)
    params = init_params(k_p, input_size, hidden_size, num_classes)

    # Small batch: single grid step, no padding.
    batch = 8
    x = jax.random.normal(k_x, (batch, input_size), jnp.float32)
    out = jax.block_until_ready(neural_model_forward(x, *params))
    assert out.shape == (batch, num_classes)
    ref = _reference(x, params)
    assert jnp.allclose(out, ref, atol=1e-2, rtol=1e-2), "mismatch vs f32 reference (B=8)"

    # Larger batch: exercises >=2 grid steps (v7x megacore path) + ragged-tail padding.
    batch2 = 300
    x2 = jax.random.normal(k_x2, (batch2, input_size), jnp.float32)
    out2 = jax.block_until_ready(neural_model_forward(x2, *params))
    assert out2.shape == (batch2, num_classes)
    ref2 = _reference(x2, params)
    assert jnp.allclose(out2, ref2, atol=1e-2, rtol=1e-2), "mismatch vs f32 reference (B=300)"

    print("KERNEL_OK")
</pallas_src>

<mosaic_0001>
module attributes {stable_mosaic.version = 11 : i64} {
  func.func @mlp_kernel(%arg0: i32, %arg1: memref<8x32xf32, #tpu.memory_space<vmem>>, %arg2: memref<32x32xf32, #tpu.memory_space<vmem>>, %arg3: memref<1x32xf32, #tpu.memory_space<vmem>>, %arg4: memref<32x32xf32, #tpu.memory_space<vmem>>, %arg5: memref<1x32xf32, #tpu.memory_space<vmem>>, %arg6: memref<32x8xf32, #tpu.memory_space<vmem>>, %arg7: memref<1x8xf32, #tpu.memory_space<vmem>>, %arg8: memref<8x8xf32, #tpu.memory_space<vmem>>) attributes {dimension_semantics = [#tpu.dimension_semantics<parallel>], iteration_bounds = array<i64: 1>, scalar_prefetch = 0 : i64, scratch_operands = 0 : i64, tpu.core_type = #tpu.core_type<tc>, window_params = [{transform_indices = @transform_0, window_bounds = array<i64: 8, 32>}, {pipeline_mode = #tpu.pipeline_mode<synchronous>, transform_indices = @transform_1, window_bounds = array<i64: 32, 32>}, {pipeline_mode = #tpu.pipeline_mode<synchronous>, transform_indices = @transform_2, window_bounds = array<i64: 1, 32>}, {pipeline_mode = #tpu.pipeline_mode<synchronous>, transform_indices = @transform_3, window_bounds = array<i64: 32, 32>}, {pipeline_mode = #tpu.pipeline_mode<synchronous>, transform_indices = @transform_4, window_bounds = array<i64: 1, 32>}, {pipeline_mode = #tpu.pipeline_mode<synchronous>, transform_indices = @transform_5, window_bounds = array<i64: 32, 8>}, {pipeline_mode = #tpu.pipeline_mode<synchronous>, transform_indices = @transform_6, window_bounds = array<i64: 1, 8>}, {transform_indices = @transform_7, window_bounds = array<i64: 8, 8>}]} {
    %c0 = arith.constant 0 : index
    %c0_0 = arith.constant 0 : index
    %0 = vector.load %arg1[%c0, %c0_0] : memref<8x32xf32, #tpu.memory_space<vmem>>, vector<8x32xf32>
    %c0_1 = arith.constant 0 : index
    %c0_2 = arith.constant 0 : index
    %1 = vector.load %arg2[%c0_1, %c0_2] : memref<32x32xf32, #tpu.memory_space<vmem>>, vector<32x32xf32>
    %cst = arith.constant dense<0.000000e+00> : vector<8x32xf32>
    %2 = tpu.matmul %0, %1, %cst {dimension_numbers = #tpu.dot_dimension_numbers<[1], [0], [0], [1], [0, 0, 1, 1], [], []>} : vector<8x32xf32>, vector<32x32xf32>, vector<8x32xf32> -> vector<8x32xf32>
    %c0_3 = arith.constant 0 : index
    %c0_4 = arith.constant 0 : index
    %3 = vector.load %arg3[%c0_3, %c0_4] : memref<1x32xf32, #tpu.memory_space<vmem>>, vector<1x32xf32>
    %4 = vector.broadcast %3 : vector<1x32xf32> to vector<8x32xf32>
    %5 = arith.addf %2, %4 : vector<8x32xf32>
    %cst_5 = arith.constant 0.000000e+00 : f32
    %6 = vector.broadcast %cst_5 : f32 to vector<8x32xf32>
    %7 = arith.maximumf %5, %6 : vector<8x32xf32>
    %c0_6 = arith.constant 0 : index
    %c0_7 = arith.constant 0 : index
    %8 = vector.load %arg4[%c0_6, %c0_7] : memref<32x32xf32, #tpu.memory_space<vmem>>, vector<32x32xf32>
    %cst_8 = arith.constant dense<0.000000e+00> : vector<8x32xf32>
    %9 = tpu.matmul %7, %8, %cst_8 {dimension_numbers = #tpu.dot_dimension_numbers<[1], [0], [0], [1], [0, 0, 1, 1], [], []>} : vector<8x32xf32>, vector<32x32xf32>, vector<8x32xf32> -> vector<8x32xf32>
    %c0_9 = arith.constant 0 : index
    %c0_10 = arith.constant 0 : index
    %10 = vector.load %arg5[%c0_9, %c0_10] : memref<1x32xf32, #tpu.memory_space<vmem>>, vector<1x32xf32>
    %11 = vector.broadcast %10 : vector<1x32xf32> to vector<8x32xf32>
    %12 = arith.addf %9, %11 : vector<8x32xf32>
    %cst_11 = arith.constant 0.000000e+00 : f32
    %13 = vector.broadcast %cst_11 : f32 to vector<8x32xf32>
    %14 = arith.maximumf %12, %13 : vector<8x32xf32>
    %c0_12 = arith.constant 0 : index
    %c0_13 = arith.constant 0 : index
    %15 = vector.load %arg6[%c0_12, %c0_13] : memref<32x8xf32, #tpu.memory_space<vmem>>, vector<32x8xf32>
    %cst_14 = arith.constant dense<0.000000e+00> : vector<8x8xf32>
    %16 = tpu.matmul %14, %15, %cst_14 {dimension_numbers = #tpu.dot_dimension_numbers<[1], [0], [0], [1], [0, 0, 1, 1], [], []>} : vector<8x32xf32>, vector<32x8xf32>, vector<8x8xf32> -> vector<8x8xf32>
    %c0_15 = arith.constant 0 : index
    %c0_16 = arith.constant 0 : index
    %17 = vector.load %arg7[%c0_15, %c0_16] : memref<1x8xf32, #tpu.memory_space<vmem>>, vector<1x8xf32>
    %18 = vector.broadcast %17 : vector<1x8xf32> to vector<8x8xf32>
    %19 = arith.addf %16, %18 : vector<8x8xf32>
    %c0_17 = arith.constant 0 : index
    %c0_18 = arith.constant 0 : index
    %20 = vector.load %arg8[%c0_17, %c0_18] : memref<8x8xf32, #tpu.memory_space<vmem>>, vector<8x8xf32>
    tpu.vector_store %arg8[%c0_17, %c0_18], %19 {strides = array<i32>} : memref<8x8xf32, #tpu.memory_space<vmem>>, vector<8x8xf32>,
    return
  }
  func.func @transform_0(%arg0: i32) -> (i32, i32) {
    %c0_i32 = arith.constant 0 : i32
    %c0_i32_0 = arith.constant 0 : i32
    return %arg0, %c0_i32 : i32, i32
  }
  func.func @transform_1(%arg0: i32) -> (i32, i32) {
    %c0_i32 = arith.constant 0 : i32
    %c0_i32_0 = arith.constant 0 : i32
    %c0_i32_1 = arith.constant 0 : i32
    return %c0_i32, %c0_i32_0 : i32, i32
  }
  func.func @transform_2(%arg0: i32) -> (i32, i32) {
    %c0_i32 = arith.constant 0 : i32
    %c0_i32_0 = arith.constant 0 : i32
    %c0_i32_1 = arith.constant 0 : i32
    return %c0_i32, %c0_i32_0 : i32, i32
  }
  func.func @transform_3(%arg0: i32) -> (i32, i32) {
    %c0_i32 = arith.constant 0 : i32
    %c0_i32_0 = arith.constant 0 : i32
    %c0_i32_1 = arith.constant 0 : i32
    return %c0_i32, %c0_i32_0 : i32, i32
  }
  func.func @transform_4(%arg0: i32) -> (i32, i32) {
    %c0_i32 = arith.constant 0 : i32
    %c0_i32_0 = arith.constant 0 : i32
    %c0_i32_1 = arith.constant 0 : i32
    return %c0_i32, %c0_i32_0 : i32, i32
  }
  func.func @transform_5(%arg0: i32) -> (i32, i32) {
    %c0_i32 = arith.constant 0 : i32
    %c0_i32_0 = arith.constant 0 : i32
    %c0_i32_1 = arith.constant 0 : i32
    return %c0_i32, %c0_i32_0 : i32, i32
  }
  func.func @transform_6(%arg0: i32) -> (i32, i32) {
    %c0_i32 = arith.constant 0 : i32
    %c0_i32_0 = arith.constant 0 : i32
    %c0_i32_1 = arith.constant 0 : i32
    return %c0_i32, %c0_i32_0 : i32, i32
  }
  func.func @transform_7(%arg0: i32) -> (i32, i32) {
    %c0_i32 = arith.constant 0 : i32
    %c0_i32_0 = arith.constant 0 : i32
    return %arg0, %c0_i32 : i32, i32
  }
}

</mosaic_0001>

<llo_original>
// kernel: tpu_custom_call.1
$region0: #{tpu_custom_call.1}
  #allocation0 [shape = 'u32[]', space=smem, size = 0x4, offset = 0x4, fixed_abs, tag = 'smem constant byte address 0x4 - core index']
  #allocation1 [shape = 'u32[144,128]{1,0:T(1,128)}', space=vmem, size = 0x12000, scoped, tag = 'internal scratch']
  %s0 = inlined_call_operand.vmem [shape: f32[8,32], index: 0, kind: input, shape index: {}]
  %s1 = inlined_call_operand.vmem [shape: f32[32,32], index: 1, kind: input, shape index: {}]
  %s2 = inlined_call_operand.vmem [shape: f32[1,32], index: 2, kind: input, shape index: {}]
  %s3 = inlined_call_operand.hbm [shape: f32[32,32], index: 3, kind: input, shape index: {}]
  %s4 = inlined_call_operand.hbm [shape: f32[1,32], index: 4, kind: input, shape index: {}]
  %s5 = inlined_call_operand.vmem [shape: f32[32,8], index: 5, kind: input, shape index: {}]
  %s6 = inlined_call_operand.vmem [shape: f32[1,8], index: 6, kind: input, shape index: {}]
  %s7 = inlined_call_operand.hbm [shape: f32[8,8], index: 7, kind: output, shape index: {}]
  %s8 = sld [smem:[#allocation0]]
  $region46: #{tpu_custom_call.1} parent=0
    _
  %s10 = ssub.s32 1, %s8
  %s11 = scalar_select 0, %s10, %s8
  $region1: #{tpu_custom_call.1} parent=0
    #allocation2 [shape = 'u8[16384]{0}', space=vmem, size = 0x4000, scoped, tag = 'input window, operand 3, single buffered']
    #allocation3 [shape = 's32[1]{0}', space=sflag, size = 0x4, scoped, tag = 'scoped memory for tpu_custom_call.1']
    #allocation4 [shape = 's32[1]{0}', space=sflag, size = 0x4, scoped, tag = 'scoped memory for tpu_custom_call.1']
    #allocation5 [shape = 'u8[512]{0}', space=vmem, size = 0x400, scoped, tag = 'input window, operand 4, single buffered']
    #allocation6 [shape = 's32[1]{0}', space=sflag, size = 0x4, scoped, tag = 'scoped memory for tpu_custom_call.1']
    #allocation7 [shape = 'u8[4096]{0}', space=vmem, size = 0x1000, scoped, tag = 'output window, operand 0, single buffered']
    %12 = vsyncpa [#allocation3], 0
    %13 = vsyncpa [#allocation6], 0
    %14 = vsyncpa [#allocation4], 0
    // Predicated region
    $region2: #{tpu_custom_call.1} parent=1 // pred_check
      _
    $region3: #{tpu_custom_call.1} parent=1 // pred_check_branch
      %16 = sbr.rel (0) target = $region5
    $region4: #{tpu_custom_call.1} parent=1 // pred_region
      _
    $region5: #{tpu_custom_call.1} parent=1 // pred_fallthru
      _
    // Predicated region
    $region6: #{tpu_custom_call.1} parent=1 // pred_check
      _
    $region7: #{tpu_custom_call.1} parent=1 // pred_check_branch
      %18 = sbr.rel (0) target = $region9
    $region8: #{tpu_custom_call.1} parent=1 // pred_region
      _
    $region9: #{tpu_custom_call.1} parent=1 // pred_fallthru
      _
    // Predicated region
    $region10: #{tpu_custom_call.1} parent=1 // pred_check
      _
    $region11: #{tpu_custom_call.1} parent=1 // pred_check_branch
      %20 = sbr.rel (0) target = $region13
    $region12: #{tpu_custom_call.1} parent=1 // pred_region
      _
    $region13: #{tpu_custom_call.1} parent=1 // pred_fallthru
      _
    // Predicated region
    $region14: #{tpu_custom_call.1} parent=1 // pred_check
      _
    $region15: #{tpu_custom_call.1} parent=1 // pred_check_branch
      %22 = sbr.rel (0) target = $region17
    $region16: #{tpu_custom_call.1} parent=1 // pred_region
      %s24 = ssub.s32 512, 512
      %25 = vsyncadd [#allocation3], %s24
      %s26 = sshll.u32 [#allocation2], 4
      %s27 = int_to_ptr.vmem [resolvable:$true] %s26
      %32 = dma.hbm_to_vmem [thread:$0]  %s3, 512, %s27, [#allocation3], 128, 128, 8
    $region17: #{tpu_custom_call.1} parent=1 // pred_fallthru
      _
    // Predicated region
    $region18: #{tpu_custom_call.1} parent=1 // pred_check
      _
    $region19: #{tpu_custom_call.1} parent=1 // pred_check_branch
      %34 = sbr.rel (0) target = $region21
    $region20: #{tpu_custom_call.1} parent=1 // pred_region
      %s36 = ssub.s32 16, 16
      %37 = vsyncadd [#allocation6], %s36
      %s39 = sshll.u32 [#allocation5], 4
      %s40 = int_to_ptr.vmem [resolvable:$true] %s39
      %42 = dma.hbm_to_vmem [thread:$0]  %s4, 16, %s40, [#allocation6]
    $region21: #{tpu_custom_call.1} parent=1 // pred_fallthru
      _
    // Predicated region
    $region22: #{tpu_custom_call.1} parent=1 // pred_check
      _
    $region23: #{tpu_custom_call.1} parent=1 // pred_check_branch
      %44 = sbr.rel (0) target = $region25
    $region24: #{tpu_custom_call.1} parent=1 // pred_region
      _
    $region25: #{tpu_custom_call.1} parent=1 // pred_fallthru
      _
    // Predicated region
    $region26: #{tpu_custom_call.1} parent=1 // pred_check
      _
    $region27: #{tpu_custom_call.1} parent=1 // pred_check_branch
      %46 = sbr.rel (0) target = $region29
    $region28: #{tpu_custom_call.1} parent=1 // pred_region
      _
    $region29: #{tpu_custom_call.1} parent=1 // pred_fallthru
      _
    // Predicated region
    $region30: #{tpu_custom_call.1} parent=1 // pred_check
      _
    $region31: #{tpu_custom_call.1} parent=1 // pred_check_branch
      %48 = sbr.rel (0) target = $region33
    $region32: #{tpu_custom_call.1} parent=1 // pred_region
      %49 = dma.done [#allocation3], 512
    $region33: #{tpu_custom_call.1} parent=1 // pred_fallthru
      _
    // Predicated region
    $region34: #{tpu_custom_call.1} parent=1 // pred_check
      _
    $region35: #{tpu_custom_call.1} parent=1 // pred_check_branch
      %51 = sbr.rel (0) target = $region37
    $region36: #{tpu_custom_call.1} parent=1 // pred_region
      %52 = dma.done [#allocation6], 16
    $region37: #{tpu_custom_call.1} parent=1 // pred_fallthru
      _
    %v53 = vld [vmem:[%s0] sm:$0xff]
    %v54 = vld [vmem:[%s1] sm:$0xff]
    %v55 = vld [vmem:[%s1 + $0x8] sm:$0xff]
    %v56 = vld [vmem:[%s1 + $0x10] sm:$0xff]
    %v57 = vld [vmem:[%s1 + $0x18] sm:$0xff]
    %v58 = vld [vmem:[%s2] sm:$0x1]
    %v60 = vlaneseq
    %v61 = vshrl.u32 %v60, 7
    %v62 = vsub.s32 0, %v61
    %v63 = vrot.slane %v58, %v62
    %vm65 = vcmask 261120
    %v67 = vsel %vm65, %v53, 0
    %69 = vmatprep.subr.mxu0 0.0
    %70 = vmatpush1.msra.mxu0 0.0
    %71 = vmatprep.subr.mxu0 0.0
    %72 = vmatpush1.msra.mxu0 0.0
    %73 = vmatprep.subr.mxu0 0.0
    %74 = vmatpush1.msra.mxu0 0.0
    %75 = vmatprep.subr.mxu0 0.0
    %76 = vmatpush1.msra.mxu0 0.0
    %77 = vmatprep.subr.mxu0 0.0
    %78 = vmatpush1.msra.mxu0 0.0
    %79 = vmatprep.subr.mxu0 0.0
    %80 = vmatpush1.msra.mxu0 0.0
    %81 = vmatprep.subr.mxu0 0.0
    %82 = vmatpush1.msra.mxu0 0.0
    %83 = vmatprep.subr.mxu0 0.0
    %84 = vmatpush1.msra.mxu0 0.0
    %85 = vmatprep.subr.mxu0 0.0
    %86 = vmatpush1.msra.mxu0 0.0
    %87 = vmatprep.subr.mxu0 0.0
    %88 = vmatpush1.msra.mxu0 0.0
    %89 = vmatprep.subr.mxu0 0.0
    %90 = vmatpush1.msra.mxu0 0.0
    %91 = vmatprep.subr.mxu0 0.0
    %92 = vmatpush1.msra.mxu0 0.0
    %93 = vmatprep.subr.mxu0 0.0
    %94 = vmatpush1.msra.mxu0 %v57
    %95 = vmatprep.subr.mxu0 0.0
    %96 = vmatpush1.msra.mxu0 %v56
    %97 = vmatprep.subr.mxu0 0.0
    %98 = vmatpush1.msra.mxu0 %v55
    %99 = vmatprep.subr.mxu0 0.0
    %100 = vmatpush1.msra.mxu0 %v54
    %101 = vmatprep.subr.mxu0 0.0
    %102 = vmatpush2.msra.mxu0 0.0
    %103 = vmatprep.subr.mxu0 0.0
    %104 = vmatpush2.msra.mxu0 0.0
    %105 = vmatprep.subr.mxu0 0.0
    %106 = vmatpush2.msra.mxu0 0.0
    %107 = vmatprep.subr.mxu0 0.0
    %108 = vmatpush2.msra.mxu0 0.0
    %109 = vmatprep.subr.mxu0 0.0
    %110 = vmatpush2.msra.mxu0 0.0
    %111 = vmatprep.subr.mxu0 0.0
    %112 = vmatpush2.msra.mxu0 0.0
    %113 = vmatprep.subr.mxu0 0.0
    %114 = vmatpush2.msra.mxu0 0.0
    %115 = vmatprep.subr.mxu0 0.0
    %116 = vmatpush2.msra.mxu0 0.0
    %117 = vmatprep.subr.mxu0 0.0
    %118 = vmatpush2.msra.mxu0 0.0
    %119 = vmatprep.subr.mxu0 0.0
    %120 = vmatpush2.msra.mxu0 0.0
    %121 = vmatprep.subr.mxu0 0.0
    %122 = vmatpush2.msra.mxu0 0.0
    %123 = vmatprep.subr.mxu0 0.0
    %124 = vmatpush2.msra.mxu0 0.0
    %125 = vmatprep.subr.mxu0 0.0
    %126 = vmatpush2.msra.mxu0 0.0
    %127 = vmatprep.subr.mxu0 0.0
    %128 = vmatpush2.msra.mxu0 0.0
    %129 = vmatprep.subr.mxu0 0.0
    %130 = vmatpush2.msra.mxu0 0.0
    %131 = vmatprep.subr.mxu0 0.0
    %132 = vmatpush2.msra.mxu0 0.0
    %133 = vmatprep.mubr.f32.mxu0 0.0
    %134 = vmatmul.mubr.f32.gmra.mxu0 %v67
    %v135 = vpop.f32.mrf.mxu0
    %v136 = vadd.f32 %v63, %v135
    %v137 = vpop.f32.mrf.mxu0
    %138 = vdwg.mxu0
    %v139 = vmax.f32 %v136, 0.0
    %v140 = vld [vmem:[#allocation2] sm:$0xff]
    %v141 = vld [vmem:[#allocation2 + $0x8] sm:$0xff]
    %v142 = vld [vmem:[#allocation2 + $0x10] sm:$0xff]
    %v143 = vld [vmem:[#allocation2 + $0x18] sm:$0xff]
    %v144 = vld [vmem:[#allocation5] sm:$0x1]
    %v146 = vlaneseq
    %v147 = vshrl.u32 %v146, 7
    %v148 = vsub.s32 0, %v147
    %v149 = vrot.slane %v144, %v148
    %v152 = vsel %vm65, %v139, 0
    %154 = vmatprep.subr.mxu0 0.0
    %155 = vmatpush1.msra.mxu0 0.0
    %156 = vmatprep.subr.mxu0 0.0
    %157 = vmatpush1.msra.mxu0 0.0
    %158 = vmatprep.subr.mxu0 0.0
    %159 = vmatpush1.msra.mxu0 0.0
    %160 = vmatprep.subr.mxu0 0.0
    %161 = vmatpush1.msra.mxu0 0.0
    %162 = vmatprep.subr.mxu0 0.0
    %163 = vmatpush1.msra.mxu0 0.0
    %164 = vmatprep.subr.mxu0 0.0
    %165 = vmatpush1.msra.mxu0 0.0
    %166 = vmatprep.subr.mxu0 0.0
    %167 = vmatpush1.msra.mxu0 0.0
    %168 = vmatprep.subr.mxu0 0.0
    %169 = vmatpush1.msra.mxu0 0.0
    %170 = vmatprep.subr.mxu0 0.0
    %171 = vmatpush1.msra.mxu0 0.0
    %172 = vmatprep.subr.mxu0 0.0
    %173 = vmatpush1.msra.mxu0 0.0
    %174 = vmatprep.subr.mxu0 0.0
    %175 = vmatpush1.msra.mxu0 0.0
    %176 = vmatprep.subr.mxu0 0.0
    %177 = vmatpush1.msra.mxu0 0.0
    %178 = vmatprep.subr.mxu0 0.0
    %179 = vmatpush1.msra.mxu0 %v143
    %180 = vmatprep.subr.mxu0 0.0
    %181 = vmatpush1.msra.mxu0 %v142
    %182 = vmatprep.subr.mxu0 0.0
    %183 = vmatpush1.msra.mxu0 %v141
    %184 = vmatprep.subr.mxu0 0.0
    %185 = vmatpush1.msra.mxu0 %v140
    %186 = vmatprep.subr.mxu0 0.0
    %187 = vmatpush2.msra.mxu0 0.0
    %188 = vmatprep.subr.mxu0 0.0
    %189 = vmatpush2.msra.mxu0 0.0
    %190 = vmatprep.subr.mxu0 0.0
    %191 = vmatpush2.msra.mxu0 0.0
    %192 = vmatprep.subr.mxu0 0.0
    %193 = vmatpush2.msra.mxu0 0.0
    %194 = vmatprep.subr.mxu0 0.0
    %195 = vmatpush2.msra.mxu0 0.0
    %196 = vmatprep.subr.mxu0 0.0
    %197 = vmatpush2.msra.mxu0 0.0
    %198 = vmatprep.subr.mxu0 0.0
    %199 = vmatpush2.msra.mxu0 0.0
    %200 = vmatprep.subr.mxu0 0.0
    %201 = vmatpush2.msra.mxu0 0.0
    %202 = vmatprep.subr.mxu0 0.0
    %203 = vmatpush2.msra.mxu0 0.0
    %204 = vmatprep.subr.mxu0 0.0
    %205 = vmatpush2.msra.mxu0 0.0
    %206 = vmatprep.subr.mxu0 0.0
    %207 = vmatpush2.msra.mxu0 0.0
    %208 = vmatprep.subr.mxu0 0.0
    %209 = vmatpush2.msra.mxu0 0.0
    %210 = vmatprep.subr.mxu0 0.0
    %211 = vmatpush2.msra.mxu0 0.0
    %212 = vmatprep.subr.mxu0 0.0
    %213 = vmatpush2.msra.mxu0 0.0
    %214 = vmatprep.subr.mxu0 0.0
    %215 = vmatpush2.msra.mxu0 0.0
    %216 = vmatprep.subr.mxu0 0.0
    %217 = vmatpush2.msra.mxu0 0.0
    %218 = vmatprep.mubr.f32.mxu0 0.0
    %219 = vmatmul.mubr.f32.gmra.mxu0 %v152
    %v220 = vpop.f32.mrf.mxu0
    %v221 = vadd.f32 %v149, %v220
    %v222 = vpop.f32.mrf.mxu0
    %223 = vdwg.mxu0
    %v224 = vmax.f32 %v221, 0.0
    %v225 = vld [vmem:[%s5] sm:$0xff]
    %v226 = vld [vmem:[%s5 + $0x8] sm:$0xff]
    %v227 = vld [vmem:[%s5 + $0x10] sm:$0xff]
    %v228 = vld [vmem:[%s5 + $0x18] sm:$0xff]
    %v229 = vld [vmem:[%s6] sm:$0x1]
    %v231 = vlaneseq
    %v232 = vshrl.u32 %v231, 7
    %v233 = vsub.s32 0, %v232
    %v234 = vrot.slane %v229, %v233
    %v237 = vsel %vm65, %v224, 0
    %239 = vmatprep.subr.mxu0 0.0
    %240 = vmatpush1.msra.mxu0 0.0
    %241 = vmatprep.subr.mxu0 0.0
    %242 = vmatpush1.msra.mxu0 0.0
    %243 = vmatprep.subr.mxu0 0.0
    %244 = vmatpush1.msra.mxu0 0.0
    %245 = vmatprep.subr.mxu0 0.0
    %246 = vmatpush1.msra.mxu0 0.0
    %247 = vmatprep.subr.mxu0 0.0
    %248 = vmatpush1.msra.mxu0 0.0
    %249 = vmatprep.subr.mxu0 0.0
    %250 = vmatpush1.msra.mxu0 0.0
    %251 = vmatprep.subr.mxu0 0.0
    %252 = vmatpush1.msra.mxu0 0.0
    %253 = vmatprep.subr.mxu0 0.0
    %254 = vmatpush1.msra.mxu0 0.0
    %255 = vmatprep.subr.mxu0 0.0
    %256 = vmatpush1.msra.mxu0 0.0
    %257 = vmatprep.subr.mxu0 0.0
    %258 = vmatpush1.msra.mxu0 0.0
    %259 = vmatprep.subr.mxu0 0.0
    %260 = vmatpush1.msra.mxu0 0.0
    %261 = vmatprep.subr.mxu0 0.0
    %262 = vmatpush1.msra.mxu0 0.0
    %263 = vmatprep.subr.mxu0 0.0
    %264 = vmatpush1.msra.mxu0 %v228
    %265 = vmatprep.subr.mxu0 0.0
    %266 = vmatpush1.msra.mxu0 %v227
    %267 = vmatprep.subr.mxu0 0.0
    %268 = vmatpush1.msra.mxu0 %v226
    %269 = vmatprep.subr.mxu0 0.0
    %270 = vmatpush1.msra.mxu0 %v225
    %271 = vmatprep.subr.mxu0 0.0
    %272 = vmatpush2.msra.mxu0 0.0
    %273 = vmatprep.subr.mxu0 0.0
    %274 = vmatpush2.msra.mxu0 0.0
    %275 = vmatprep.subr.mxu0 0.0
    %276 = vmatpush2.msra.mxu0 0.0
    %277 = vmatprep.subr.mxu0 0.0
    %278 = vmatpush2.msra.mxu0 0.0
    %279 = vmatprep.subr.mxu0 0.0
    %280 = vmatpush2.msra.mxu0 0.0
    %281 = vmatprep.subr.mxu0 0.0
    %282 = vmatpush2.msra.mxu0 0.0
    %283 = vmatprep.subr.mxu0 0.0
    %284 = vmatpush2.msra.mxu0 0.0
    %285 = vmatprep.subr.mxu0 0.0
    %286 = vmatpush2.msra.mxu0 0.0
    %287 = vmatprep.subr.mxu0 0.0
    %288 = vmatpush2.msra.mxu0 0.0
    %289 = vmatprep.subr.mxu0 0.0
    %290 = vmatpush2.msra.mxu0 0.0
    %291 = vmatprep.subr.mxu0 0.0
    %292 = vmatpush2.msra.mxu0 0.0
    %293 = vmatprep.subr.mxu0 0.0
    %294 = vmatpush2.msra.mxu0 0.0
    %295 = vmatprep.subr.mxu0 0.0
    %296 = vmatpush2.msra.mxu0 0.0
    %297 = vmatprep.subr.mxu0 0.0
    %298 = vmatpush2.msra.mxu0 0.0
    %299 = vmatprep.subr.mxu0 0.0
    %300 = vmatpush2.msra.mxu0 0.0
    %301 = vmatprep.subr.mxu0 0.0
    %302 = vmatpush2.msra.mxu0 0.0
    %303 = vmatprep.mubr.f32.mxu0 0.0
    %304 = vmatmul.mubr.f32.gmra.mxu0 %v237
    %v305 = vpop.f32.mrf.mxu0
    %v306 = vadd.f32 %v234, %v305
    %v307 = vpop.f32.mrf.mxu0
    %308 = vdwg.mxu0
    %vm309 = vcmask 64512
    %310 = vst.msk [vmem:[#allocation7] sm:$0xff] %vm309, %v306
    // Predicated region
    $region38: #{tpu_custom_call.1} parent=1 // pred_check
      _
    $region39: #{tpu_custom_call.1} parent=1 // pred_check_branch
      %312 = sbr.rel (0) target = $region41
    $region40: #{tpu_custom_call.1} parent=1 // pred_region
      %s314 = ssub.s32 128, 128
      %315 = vsyncadd [#allocation4], %s314
      %s317 = sshll.u32 [#allocation7], 4
      %s318 = int_to_ptr.vmem [resolvable:$true] %s317
      %320 = dma.vmem_to_hbm [thread:$0]  %s318, 128, %s7, [#allocation4]
    $region41: #{tpu_custom_call.1} parent=1 // pred_fallthru
      _
    // Predicated region
    $region42: #{tpu_custom_call.1} parent=1 // pred_check
      _
    $region43: #{tpu_custom_call.1} parent=1 // pred_check_branch
      %322 = sbr.rel (0) target = $region45
    $region44: #{tpu_custom_call.1} parent=1 // pred_region
      %323 = dma.done [#allocation4], 128
    $region45: #{tpu_custom_call.1} parent=1 // pred_fallthru
      _
    %324 = vsyncpa [#allocation3], 1
    %325 = vsyncpa [#allocation6], 1
    %326 = vsyncpa [#allocation4], 1

</llo_original>
